<compile_context>
chip_gen: v6e
topology: v6e:2x2x1
jax: 0.10.0
libtpu: 0.0.40
codegen_flags: <defaults>
</compile_context>

<pallas_src>
import functools

import jax
import jax.numpy as jnp
import numpy as np
from jax.experimental import pallas as pl
from jax.experimental.pallas import tpu as pltpu


# ---------------------------------------------------------------------------
# Exact GELU (matches torch.nn.GELU() erf form) from guaranteed-lowerable ops.
# ---------------------------------------------------------------------------
def _erf_f32(x):
    # Abramowitz & Stegun 7.1.26, |error| <= 1.5e-7 (f32-level accuracy).
    a1, a2, a3, a4, a5 = (0.254829592, -0.284496736, 1.421413741,
                          -1.453152027, 1.061405429)
    p = 0.3275911
    ax = jnp.abs(x)
    t = 1.0 / (1.0 + p * ax)
    poly = ((((a5 * t + a4) * t + a3) * t + a2) * t + a1) * t
    e = 1.0 - poly * jnp.exp(-ax * ax)
    return jnp.where(x < 0, -e, e)


def _gelu_exact(x):
    return 0.5 * x * (1.0 + _erf_f32(x * 0.7071067811865476))


# ---------------------------------------------------------------------------
# Fused PatchEmbed kernel: conv1(3x3/s2)+BN+GELU -> conv2(3x3/s2)+BN
# ---------------------------------------------------------------------------
def _patch_embed_kernel(xs_ref, w1_ref, b1_ref, w2_ref, b2_ref, o_ref,
                        mid_ref, pa_ref, pb_ref):
    # Static geometry, all derived from ref shapes.
    cin4 = xs_ref.shape[3]           # 4 * in_chans (2x2 space-to-depth chans)
    w_mid = xs_ref.shape[2] - 1      # W/2  (input has one pad block-col left)
    h_tile = o_ref.shape[1]          # output rows (H/4 resolution) per tile
    w_out = o_ref.shape[2]           # W/4
    c_out = o_ref.shape[3]           # embed_dim
    c_mid = mid_ref.shape[2]         # embed_dim // 2
    n_mid = mid_ref.shape[0] - 1     # = 2*h_tile + 1 intermediate rows per tile

    g = pl.program_id(1)
    # Intermediate row -1 is conv2's zero padding: only the first row tile
    # skips it (it stays zero in the scratch); every other tile starts one
    # real row earlier to cover conv2's top halo.
    pad_top = jnp.where(g == 0, 1, 0)
    r2_start = 2 * g * h_tile - 1 + pad_top   # first intermediate row computed

    # Zero the intermediate scratch so conv2's top/left halo reads zeros.
    # (Only row 0 / col 0 strictly need it; the full clear is cheap VMEM
    # traffic next to the matmuls and keeps the indexing obviously safe.)
    mid_ref[...] = jnp.zeros_like(mid_ref)

    xs = xs_ref.at[0]                # (H/2 + 2, W/2 + 1, 4*Cin) view

    # ---- Conv2d_BN #1: 3x3/s2 expressed as 2x2/s1 over the space-to-depth
    # ---- input.  im2col: 4 contiguous taps -> one (M, 16*Cin)x(16*Cin, C1)
    # ---- MXU matmul, then bias + exact GELU.
    for t, (dy, dx) in enumerate(((0, 0), (0, 1), (1, 0), (1, 1))):
        tap = xs[pl.ds(r2_start + dy, n_mid), pl.ds(dx, w_mid), :]
        pa_ref[:, pl.ds(t * cin4, cin4)] = tap.reshape(n_mid * w_mid, cin4)
    y = jnp.dot(pa_ref[...], w1_ref[...], preferred_element_type=jnp.float32)
    y = _gelu_exact(y + b1_ref[...])
    mid_ref[pl.ds(pad_top, n_mid), pl.ds(1, w_mid), :] = (
        y.reshape(n_mid, w_mid, c_mid).astype(mid_ref.dtype))

    # ---- Conv2d_BN #2: 3x3/s2 on the VMEM-resident intermediate.
    # ---- im2col: 9 taps -> one (M, 9*C1) x (9*C1, C2) MXU matmul.
    for t, (kh, kw) in enumerate([(i, j) for i in range(3) for j in range(3)]):
        tap = mid_ref[pl.ds(kh, h_tile, 2), pl.ds(kw, w_out, 2), :]
        pb_ref[:, pl.ds(t * c_mid, c_mid)] = tap.reshape(h_tile * w_out, c_mid)
    z = jnp.dot(pb_ref[...], w2_ref[...], preferred_element_type=jnp.float32)
    z = z + b2_ref[...]
    o_ref[0] = z.reshape(h_tile, w_out, c_out).astype(o_ref.dtype)


def _pick_tile_rows(h_out, w_out, target_pixels=512):
    """Largest divisor of h_out keeping ~target_pixels output pixels per tile."""
    if h_out * w_out <= target_pixels:
        return h_out
    best = 1
    for d in range(1, h_out + 1):
        if h_out % d == 0 and d * w_out <= target_pixels:
            best = d
    return best


# ---------------------------------------------------------------------------
# Public wrapper: NCHW in, NCHW out (matches the PyTorch module interface).
# ---------------------------------------------------------------------------
@functools.partial(jax.jit, static_argnames=("tile_out_rows",))
def patch_embed_forward(x_nchw, params, *, tile_out_rows=None):
    (w1_hwio, b1_vec), (w2_hwio, b2_vec) = params
    B, Cin, H, W = x_nchw.shape
    if H % 4 or W % 4:
        raise ValueError("PatchEmbed kernel expects H and W divisible by 4.")
    C1 = w1_hwio.shape[-1]
    C2 = w2_hwio.shape[-1]
    H2, W2, H4, W4 = H // 2, W // 2, H // 4, W // 4

    th4 = tile_out_rows if tile_out_rows is not None else _pick_tile_rows(H4, W4)
    if th4 < 1 or H4 % th4:
        raise ValueError("tile_out_rows must divide H//4.")
    G = H4 // th4

    # Single layout pass over the input (subsumes the NCHW->NHWC transpose and
    # the halo zero-padding): NCHW -> pad -> 2x2 space-to-depth NHWC.
    # Rows get (1, 3) padding so the space-to-depth image has H/2 + 2 block
    # rows (the extra bottom rows keep every in-kernel read in bounds).
    xp = jnp.pad(x_nchw, ((0, 0), (0, 0), (1, 3), (1, 1)))
    xs = (xp.reshape(B, Cin, H2 + 2, 2, W2 + 1, 2)
            .transpose(0, 2, 4, 3, 5, 1)
            .reshape(B, H2 + 2, W2 + 1, 4 * Cin))

    # Conv1 weights -> space-to-depth matmul form (16*Cin, C1).  Sub-positions
    # falling outside the original 3x3 window get zero weights.
    w1s = jnp.zeros((2, 2, 2, 2, Cin, C1), w1_hwio.dtype)
    for dy in range(2):
        for py in range(2):
            if 2 * dy + py > 2:
                continue
            for dx in range(2):
                for px in range(2):
                    if 2 * dx + px > 2:
                        continue
                    w1s = w1s.at[dy, dx, py, px].set(
                        w1_hwio[2 * dy + py, 2 * dx + px])
    w1m = w1s.reshape(16 * Cin, C1)
    w2m = w2_hwio.reshape(9 * C1, C2)

    out_nhwc = pl.pallas_call(
        _patch_embed_kernel,
        out_shape=jax.ShapeDtypeStruct((B, H4, W4, C2), x_nchw.dtype),
        grid_spec=pltpu.PrefetchScalarGridSpec(
            num_scalar_prefetch=0,
            grid=(B, G),
            in_specs=[
                # Whole (space-to-depth) image per batch; stays resident across
                # the row-tile axis (same block index for every g).
                pl.BlockSpec((1, H2 + 2, W2 + 1, 4 * Cin),
                             lambda b, g: (b, 0, 0, 0)),
                pl.BlockSpec((16 * Cin, C1), lambda b, g: (0, 0)),
                pl.BlockSpec((1, C1), lambda b, g: (0, 0)),
                pl.BlockSpec((9 * C1, C2), lambda b, g: (0, 0)),
                pl.BlockSpec((1, C2), lambda b, g: (0, 0)),
            ],
            out_specs=pl.BlockSpec((1, th4, W4, C2), lambda b, g: (b, g, 0, 0)),
            scratch_shapes=[
                # Padded intermediate rows for this tile (never hits HBM).
                pltpu.VMEM((2 * th4 + 2, W2 + 1, C1), x_nchw.dtype),
                # im2col patch matrices for the two single-shot matmuls.
                pltpu.VMEM(((2 * th4 + 1) * W2, 16 * Cin), x_nchw.dtype),
                pltpu.VMEM((th4 * W4, 9 * C1), x_nchw.dtype),
            ],
        ),
        compiler_params=pltpu.CompilerParams(
            dimension_semantics=("parallel", "parallel"),
            vmem_limit_bytes=32 * 1024 * 1024,
        ),
    )(xs, w1m, b1_vec.reshape(1, C1), w2m, b2_vec.reshape(1, C2))

    # NHWC -> NCHW to match the PyTorch module's interface.  (Layout glue; a
    # fully-NHWC surrounding model would drop this HBM pass.)
    return jnp.transpose(out_nhwc, (0, 3, 1, 2))


# ---------------------------------------------------------------------------
# Parameter construction (Conv2d bias=False + BatchNorm2d folded, eval mode).
# ---------------------------------------------------------------------------
def init_conv_bn_params(key, c_in, c_out, ks=3, eps=1e-5, bn_weight_init=1.0):
    fan_in = c_in * ks * ks
    w = jax.random.normal(key, (ks, ks, c_in, c_out), jnp.float32) / jnp.sqrt(
        jnp.float32(fan_in))
    gamma = jnp.full((c_out,), bn_weight_init, jnp.float32)
    beta = jnp.zeros((c_out,), jnp.float32)
    running_mean = jnp.zeros((c_out,), jnp.float32)
    running_var = jnp.ones((c_out,), jnp.float32)
    scale = gamma / jnp.sqrt(running_var + eps)
    return w * scale, beta - running_mean * scale


def init_patch_embed_params(key, in_chans, embed_dim):
    k1, k2 = jax.random.split(key)
    return (init_conv_bn_params(k1, in_chans, embed_dim // 2),
            init_conv_bn_params(k2, embed_dim // 2, embed_dim))


# ---------------------------------------------------------------------------
# Pure-JAX reference (for the in-script correctness check).
# ---------------------------------------------------------------------------
def _patch_embed_reference(x_nchw, params):
    (w1, b1), (w2, b2) = params

    def conv_bn(x, w, b):
        y = jax.lax.conv_general_dilated(
            x, w, window_strides=(2, 2), padding=((1, 1), (1, 1)),
            dimension_numbers=("NCHW", "HWIO", "NCHW"),
            precision=jax.lax.Precision.HIGHEST)
        return y + b[None, :, None, None]

    y = conv_bn(x_nchw, w1, b1)
    y = jax.nn.gelu(y, approximate=False)   # torch.nn.GELU() default (erf form)
    return conv_bn(y, w2, b2)


if __name__ == "__main__":
    key = jax.random.PRNGKey(0)
    k_x1, k_p1, k_x2, k_p2 = jax.random.split(key, 4)

    # Case 1: small shape from the brief; tile_out_rows=2 exercises the
    # row-tiled grid path (G = 2) including the top-halo handling.
    in_chans, embed_dim, batch, spatial = 4, 32, 2, 16
    x1 = jax.random.normal(k_x1, (batch, in_chans, spatial, spatial), jnp.float32)
    params1 = init_patch_embed_params(k_p1, in_chans, embed_dim)
    out1 = jax.block_until_ready(patch_embed_forward(x1, params1, tile_out_rows=2))
    assert out1.shape == (batch, embed_dim, spatial // 4, spatial // 4), out1.shape
    assert out1.dtype == jnp.float32
    ref1 = jax.block_until_ready(_patch_embed_reference(x1, params1))
    np.testing.assert_allclose(np.asarray(out1), np.asarray(ref1),
                               rtol=2e-2, atol=2e-2)

    # Case 2: different channel counts, single-tile (G = 1) path.
    x2 = jax.random.normal(k_x2, (1, 3, 32, 32), jnp.float32)
    params2 = init_patch_embed_params(k_p2, 3, 64)
    out2 = jax.block_until_ready(patch_embed_forward(x2, params2))
    assert out2.shape == (1, 64, 8, 8), out2.shape
    ref2 = jax.block_until_ready(_patch_embed_reference(x2, params2))
    np.testing.assert_allclose(np.asarray(out2), np.asarray(ref2),
                               rtol=2e-2, atol=2e-2)

    print("KERNEL_OK")
</pallas_src>

<mosaic_0001>
module attributes {stable_mosaic.version = 11 : i64} {
  func.func @_patch_embed_kernel(%arg0: i32, %arg1: i32, %arg2: memref<1x10x9x16xf32, #tpu.memory_space<vmem>>, %arg3: memref<64x16xf32, #tpu.memory_space<vmem>>, %arg4: memref<1x16xf32, #tpu.memory_space<vmem>>, %arg5: memref<144x32xf32, #tpu.memory_space<vmem>>, %arg6: memref<1x32xf32, #tpu.memory_space<vmem>>, %arg7: memref<1x2x4x32xf32, #tpu.memory_space<vmem>>, %arg8: memref<6x9x16xf32, #tpu.memory_space<vmem>>, %arg9: memref<40x64xf32, #tpu.memory_space<vmem>>, %arg10: memref<8x144xf32, #tpu.memory_space<vmem>>) attributes {dimension_semantics = [#tpu.dimension_semantics<parallel>, #tpu.dimension_semantics<parallel>], iteration_bounds = array<i64: 2, 2>, scalar_prefetch = 0 : i64, scratch_operands = 3 : i64, tpu.core_type = #tpu.core_type<tc>, window_params = [{transform_indices = @transform_0, window_bounds = array<i64: 1, 10, 9, 16>}, {pipeline_mode = #tpu.pipeline_mode<synchronous>, transform_indices = @transform_1, window_bounds = array<i64: 64, 16>}, {pipeline_mode = #tpu.pipeline_mode<synchronous>, transform_indices = @transform_2, window_bounds = array<i64: 1, 16>}, {pipeline_mode = #tpu.pipeline_mode<synchronous>, transform_indices = @transform_3, window_bounds = array<i64: 144, 32>}, {pipeline_mode = #tpu.pipeline_mode<synchronous>, transform_indices = @transform_4, window_bounds = array<i64: 1, 32>}, {transform_indices = @transform_5, window_bounds = array<i64: 1, 2, 4, 32>}]} {
    %c0_i32 = arith.constant 0 : i32
    %0 = arith.cmpi eq, %arg1, %c0_i32 : i32
    %c1_i32 = arith.constant 1 : i32
    %c0_i32_0 = arith.constant 0 : i32
    %1 = arith.select %0, %c1_i32, %c0_i32_0 : i32
    %c2_i32 = arith.constant 2 : i32
    %2 = arith.muli %c2_i32, %arg1 : i32
    %c2_i32_1 = arith.constant 2 : i32
    %3 = arith.muli %2, %c2_i32_1 : i32
    %c1_i32_2 = arith.constant 1 : i32
    %4 = arith.subi %3, %c1_i32_2 : i32
    %5 = arith.addi %4, %1 : i32
    %cst = arith.constant 0.000000e+00 : f32
    %6 = vector.broadcast %cst : f32 to vector<6x9x16xf32>
    %c0 = arith.constant 0 : index
    %c0_3 = arith.constant 0 : index
    %c0_4 = arith.constant 0 : index
    %7 = vector.load %arg8[%c0, %c0_3, %c0_4] : memref<6x9x16xf32, #tpu.memory_space<vmem>>, vector<6x9x16xf32>
    tpu.vector_store %arg8[%c0, %c0_3, %c0_4], %6 {strides = array<i32>} : memref<6x9x16xf32, #tpu.memory_space<vmem>>, vector<6x9x16xf32>,
    %c0_i32_5 = arith.constant 0 : i32
    %8 = arith.addi %5, %c0_i32_5 : i32
    %c0_i32_6 = arith.constant 0 : i32
    %c0_i32_7 = arith.constant 0 : i32
    %c0_i32_8 = arith.constant 0 : i32
    %c0_i32_9 = arith.constant 0 : i32
    %9 = tpu.memref_slice %arg2[%c0_i32_6, %c0_i32_7, %c0_i32_8, %c0_i32_9] : memref<1x10x9x16xf32, #tpu.memory_space<vmem>> -> memref<1x10x9x16xf32, #tpu.memory_space<vmem>>
    %10 = tpu.memref_squeeze %9 : memref<1x10x9x16xf32, #tpu.memory_space<vmem>> -> memref<10x9x16xf32, #tpu.memory_space<vmem>>
    %11 = arith.index_cast %8 : i32 to index
    %c0_10 = arith.constant 0 : index
    %c0_11 = arith.constant 0 : index
    %12 = vector.load %10[%11, %c0_10, %c0_11] : memref<10x9x16xf32, #tpu.memory_space<vmem>>, vector<5x8x16xf32>
    %13 = vector.shape_cast %12 : vector<5x8x16xf32> to vector<40x16xf32>
    %c0_12 = arith.constant 0 : index
    %c0_13 = arith.constant 0 : index
    %14 = vector.load %arg9[%c0_12, %c0_13] : memref<40x64xf32, #tpu.memory_space<vmem>>, vector<40x16xf32>
    tpu.vector_store %arg9[%c0_12, %c0_13], %13 {strides = array<i32>} : memref<40x64xf32, #tpu.memory_space<vmem>>, vector<40x16xf32>,
    %c0_i32_14 = arith.constant 0 : i32
    %15 = arith.addi %5, %c0_i32_14 : i32
    %c0_i32_15 = arith.constant 0 : i32
    %c0_i32_16 = arith.constant 0 : i32
    %c0_i32_17 = arith.constant 0 : i32
    %c0_i32_18 = arith.constant 0 : i32
    %16 = tpu.memref_slice %arg2[%c0_i32_15, %c0_i32_16, %c0_i32_17, %c0_i32_18] : memref<1x10x9x16xf32, #tpu.memory_space<vmem>> -> memref<1x10x9x16xf32, #tpu.memory_space<vmem>>
    %17 = tpu.memref_squeeze %16 : memref<1x10x9x16xf32, #tpu.memory_space<vmem>> -> memref<10x9x16xf32, #tpu.memory_space<vmem>>
    %18 = arith.index_cast %15 : i32 to index
    %c1 = arith.constant 1 : index
    %c0_19 = arith.constant 0 : index
    %19 = vector.load %17[%18, %c1, %c0_19] : memref<10x9x16xf32, #tpu.memory_space<vmem>>, vector<5x8x16xf32>
    %20 = vector.shape_cast %19 : vector<5x8x16xf32> to vector<40x16xf32>
    %c0_20 = arith.constant 0 : index
    %c16 = arith.constant 16 : index
    %21 = vector.load %arg9[%c0_20, %c16] : memref<40x64xf32, #tpu.memory_space<vmem>>, vector<40x16xf32>
    tpu.vector_store %arg9[%c0_20, %c16], %20 {strides = array<i32>} : memref<40x64xf32, #tpu.memory_space<vmem>>, vector<40x16xf32>,
    %c1_i32_21 = arith.constant 1 : i32
    %22 = arith.addi %5, %c1_i32_21 : i32
    %c0_i32_22 = arith.constant 0 : i32
    %c0_i32_23 = arith.constant 0 : i32
    %c0_i32_24 = arith.constant 0 : i32
    %c0_i32_25 = arith.constant 0 : i32
    %23 = tpu.memref_slice %arg2[%c0_i32_22, %c0_i32_23, %c0_i32_24, %c0_i32_25] : memref<1x10x9x16xf32, #tpu.memory_space<vmem>> -> memref<1x10x9x16xf32, #tpu.memory_space<vmem>>
    %24 = tpu.memref_squeeze %23 : memref<1x10x9x16xf32, #tpu.memory_space<vmem>> -> memref<10x9x16xf32, #tpu.memory_space<vmem>>
    %25 = arith.index_cast %22 : i32 to index
    %c0_26 = arith.constant 0 : index
    %c0_27 = arith.constant 0 : index
    %26 = vector.load %24[%25, %c0_26, %c0_27] : memref<10x9x16xf32, #tpu.memory_space<vmem>>, vector<5x8x16xf32>
    %27 = vector.shape_cast %26 : vector<5x8x16xf32> to vector<40x16xf32>
    %c0_28 = arith.constant 0 : index
    %c32 = arith.constant 32 : index
    %28 = vector.load %arg9[%c0_28, %c32] : memref<40x64xf32, #tpu.memory_space<vmem>>, vector<40x16xf32>
    tpu.vector_store %arg9[%c0_28, %c32], %27 {strides = array<i32>} : memref<40x64xf32, #tpu.memory_space<vmem>>, vector<40x16xf32>,
    %c1_i32_29 = arith.constant 1 : i32
    %29 = arith.addi %5, %c1_i32_29 : i32
    %c0_i32_30 = arith.constant 0 : i32
    %c0_i32_31 = arith.constant 0 : i32
    %c0_i32_32 = arith.constant 0 : i32
    %c0_i32_33 = arith.constant 0 : i32
    %30 = tpu.memref_slice %arg2[%c0_i32_30, %c0_i32_31, %c0_i32_32, %c0_i32_33] : memref<1x10x9x16xf32, #tpu.memory_space<vmem>> -> memref<1x10x9x16xf32, #tpu.memory_space<vmem>>
    %31 = tpu.memref_squeeze %30 : memref<1x10x9x16xf32, #tpu.memory_space<vmem>> -> memref<10x9x16xf32, #tpu.memory_space<vmem>>
    %32 = arith.index_cast %29 : i32 to index
    %c1_34 = arith.constant 1 : index
    %c0_35 = arith.constant 0 : index
    %33 = vector.load %31[%32, %c1_34, %c0_35] : memref<10x9x16xf32, #tpu.memory_space<vmem>>, vector<5x8x16xf32>
    %34 = vector.shape_cast %33 : vector<5x8x16xf32> to vector<40x16xf32>
    %c0_36 = arith.constant 0 : index
    %c48 = arith.constant 48 : index
    %35 = vector.load %arg9[%c0_36, %c48] : memref<40x64xf32, #tpu.memory_space<vmem>>, vector<40x16xf32>
    tpu.vector_store %arg9[%c0_36, %c48], %34 {strides = array<i32>} : memref<40x64xf32, #tpu.memory_space<vmem>>, vector<40x16xf32>,
    %c0_37 = arith.constant 0 : index
    %c0_38 = arith.constant 0 : index
    %36 = vector.load %arg9[%c0_37, %c0_38] : memref<40x64xf32, #tpu.memory_space<vmem>>, vector<40x64xf32>
    %c0_39 = arith.constant 0 : index
    %c0_40 = arith.constant 0 : index
    %37 = vector.load %arg3[%c0_39, %c0_40] : memref<64x16xf32, #tpu.memory_space<vmem>>, vector<64x16xf32>
    %cst_41 = arith.constant dense<0.000000e+00> : vector<40x16xf32>
    %38 = tpu.matmul %36, %37, %cst_41 {dimension_numbers = #tpu.dot_dimension_numbers<[1], [0], [0], [1], [0, 0, 1, 1], [], []>} : vector<40x64xf32>, vector<64x16xf32>, vector<40x16xf32> -> vector<40x16xf32>
    %c0_42 = arith.constant 0 : index
    %c0_43 = arith.constant 0 : index
    %39 = vector.load %arg4[%c0_42, %c0_43] : memref<1x16xf32, #tpu.memory_space<vmem>>, vector<1x16xf32>
    %40 = vector.broadcast %39 : vector<1x16xf32> to vector<40x16xf32>
    %41 = arith.addf %38, %40 : vector<40x16xf32>
    %cst_44 = arith.constant 5.000000e-01 : f32
    %42 = vector.broadcast %cst_44 : f32 to vector<40x16xf32>
    %43 = arith.mulf %42, %41 : vector<40x16xf32>
    %cst_45 = arith.constant 0.707106769 : f32
    %44 = vector.broadcast %cst_45 : f32 to vector<40x16xf32>
    %45 = arith.mulf %41, %44 : vector<40x16xf32>
    %46 = math.absf %45 : vector<40x16xf32>
    %cst_46 = arith.constant 0.327591091 : f32
    %47 = vector.broadcast %cst_46 : f32 to vector<40x16xf32>
    %48 = arith.mulf %47, %46 : vector<40x16xf32>
    %cst_47 = arith.constant 1.000000e+00 : f32
    %49 = vector.broadcast %cst_47 : f32 to vector<40x16xf32>
    %50 = arith.addf %49, %48 : vector<40x16xf32>
    %cst_48 = arith.constant 1.000000e+00 : f32
    %51 = vector.broadcast %cst_48 : f32 to vector<40x16xf32>
    %52 = arith.divf %51, %50 : vector<40x16xf32>
    %cst_49 = arith.constant 1.06140542 : f32
    %53 = vector.broadcast %cst_49 : f32 to vector<40x16xf32>
    %54 = arith.mulf %53, %52 : vector<40x16xf32>
    %cst_50 = arith.constant -1.45315206 : f32
    %55 = vector.broadcast %cst_50 : f32 to vector<40x16xf32>
    %56 = arith.addf %54, %55 : vector<40x16xf32>
    %57 = arith.mulf %56, %52 : vector<40x16xf32>
    %cst_51 = arith.constant 1.42141378 : f32
    %58 = vector.broadcast %cst_51 : f32 to vector<40x16xf32>
    %59 = arith.addf %57, %58 : vector<40x16xf32>
    %60 = arith.mulf %59, %52 : vector<40x16xf32>
    %cst_52 = arith.constant -0.284496725 : f32
    %61 = vector.broadcast %cst_52 : f32 to vector<40x16xf32>
    %62 = arith.addf %60, %61 : vector<40x16xf32>
    %63 = arith.mulf %62, %52 : vector<40x16xf32>
    %cst_53 = arith.constant 0.254829586 : f32
    %64 = vector.broadcast %cst_53 : f32 to vector<40x16xf32>
    %65 = arith.addf %63, %64 : vector<40x16xf32>
    %66 = arith.mulf %65, %52 : vector<40x16xf32>
    %cst_54 = arith.constant 0.000000e+00 : f32
    %67 = vector.broadcast %cst_54 : f32 to vector<40x16xf32>
    %68 = arith.subf %67, %46 : vector<40x16xf32>
    %69 = arith.mulf %68, %46 : vector<40x16xf32>
    %70 = math.exp %69 : vector<40x16xf32>
    %71 = arith.mulf %66, %70 : vector<40x16xf32>
    %cst_55 = arith.constant 1.000000e+00 : f32
    %72 = vector.broadcast %cst_55 : f32 to vector<40x16xf32>
    %73 = arith.subf %72, %71 : vector<40x16xf32>
    %cst_56 = arith.constant 0.000000e+00 : f32
    %74 = vector.broadcast %cst_56 : f32 to vector<40x16xf32>
    %75 = arith.cmpf olt, %45, %74 : vector<40x16xf32>
    %cst_57 = arith.constant 0.000000e+00 : f32
    %76 = vector.broadcast %cst_57 : f32 to vector<40x16xf32>
    %77 = arith.subf %76, %73 : vector<40x16xf32>
    %78 = arith.select %75, %77, %73 : vector<40x16xi1>, vector<40x16xf32>
    %cst_58 = arith.constant 1.000000e+00 : f32
    %79 = vector.broadcast %cst_58 : f32 to vector<40x16xf32>
    %80 = arith.addf %79, %78 : vector<40x16xf32>
    %81 = arith.mulf %43, %80 : vector<40x16xf32>
    %82 = vector.shape_cast %81 : vector<40x16xf32> to vector<5x8x16xf32>
    %83 = arith.index_cast %1 : i32 to index
    %c1_59 = arith.constant 1 : index
    %c0_60 = arith.constant 0 : index
    %84 = vector.load %arg8[%83, %c1_59, %c0_60] : memref<6x9x16xf32, #tpu.memory_space<vmem>>, vector<5x8x16xf32>
    tpu.vector_store %arg8[%83, %c1_59, %c0_60], %82 {strides = array<i32>} : memref<6x9x16xf32, #tpu.memory_space<vmem>>, vector<5x8x16xf32>,
    %c0_61 = arith.constant 0 : index
    %c0_62 = arith.constant 0 : index
    %c0_63 = arith.constant 0 : index
    %85 = tpu.strided_load %arg8[%c0_61, %c0_62, %c0_63] {strides = array<i32: 2, 2, 1>} : memref<6x9x16xf32, #tpu.memory_space<vmem>>, vector<2x4x16xf32>
    %86 = vector.shape_cast %85 : vector<2x4x16xf32> to vector<8x16xf32>
    %c0_64 = arith.constant 0 : index
    %c0_65 = arith.constant 0 : index
    %87 = vector.load %arg10[%c0_64, %c0_65] : memref<8x144xf32, #tpu.memory_space<vmem>>, vector<8x16xf32>
    tpu.vector_store %arg10[%c0_64, %c0_65], %86 {strides = array<i32>} : memref<8x144xf32, #tpu.memory_space<vmem>>, vector<8x16xf32>,
    %c0_66 = arith.constant 0 : index
    %c1_67 = arith.constant 1 : index
    %c0_68 = arith.constant 0 : index
    %88 = tpu.strided_load %arg8[%c0_66, %c1_67, %c0_68] {strides = array<i32: 2, 2, 1>} : memref<6x9x16xf32, #tpu.memory_space<vmem>>, vector<2x4x16xf32>
    %89 = vector.shape_cast %88 : vector<2x4x16xf32> to vector<8x16xf32>
    %c0_69 = arith.constant 0 : index
    %c16_70 = arith.constant 16 : index
    %90 = vector.load %arg10[%c0_69, %c16_70] : memref<8x144xf32, #tpu.memory_space<vmem>>, vector<8x16xf32>
    tpu.vector_store %arg10[%c0_69, %c16_70], %89 {strides = array<i32>} : memref<8x144xf32, #tpu.memory_space<vmem>>, vector<8x16xf32>,
    %c0_71 = arith.constant 0 : index
    %c2 = arith.constant 2 : index
    %c0_72 = arith.constant 0 : index
    %91 = tpu.strided_load %arg8[%c0_71, %c2, %c0_72] {strides = array<i32: 2, 2, 1>} : memref<6x9x16xf32, #tpu.memory_space<vmem>>, vector<2x4x16xf32>
    %92 = vector.shape_cast %91 : vector<2x4x16xf32> to vector<8x16xf32>
    %c0_73 = arith.constant 0 : index
    %c32_74 = arith.constant 32 : index
    %93 = vector.load %arg10[%c0_73, %c32_74] : memref<8x144xf32, #tpu.memory_space<vmem>>, vector<8x16xf32>
    tpu.vector_store %arg10[%c0_73, %c32_74], %92 {strides = array<i32>} : memref<8x144xf32, #tpu.memory_space<vmem>>, vector<8x16xf32>,
    %c1_75 = arith.constant 1 : index
    %c0_76 = arith.constant 0 : index
    %c0_77 = arith.constant 0 : index
    %94 = tpu.strided_load %arg8[%c1_75, %c0_76, %c0_77] {strides = array<i32: 2, 2, 1>} : memref<6x9x16xf32, #tpu.memory_space<vmem>>, vector<2x4x16xf32>
    %95 = vector.shape_cast %94 : vector<2x4x16xf32> to vector<8x16xf32>
    %c0_78 = arith.constant 0 : index
    %c48_79 = arith.constant 48 : index
    %96 = vector.load %arg10[%c0_78, %c48_79] : memref<8x144xf32, #tpu.memory_space<vmem>>, vector<8x16xf32>
    tpu.vector_store %arg10[%c0_78, %c48_79], %95 {strides = array<i32>} : memref<8x144xf32, #tpu.memory_space<vmem>>, vector<8x16xf32>,
    %c1_80 = arith.constant 1 : index
    %c1_81 = arith.constant 1 : index
    %c0_82 = arith.constant 0 : index
    %97 = tpu.strided_load %arg8[%c1_80, %c1_81, %c0_82] {strides = array<i32: 2, 2, 1>} : memref<6x9x16xf32, #tpu.memory_space<vmem>>, vector<2x4x16xf32>
    %98 = vector.shape_cast %97 : vector<2x4x16xf32> to vector<8x16xf32>
    %c0_83 = arith.constant 0 : index
    %c64 = arith.constant 64 : index
    %99 = vector.load %arg10[%c0_83, %c64] : memref<8x144xf32, #tpu.memory_space<vmem>>, vector<8x16xf32>
    tpu.vector_store %arg10[%c0_83, %c64], %98 {strides = array<i32>} : memref<8x144xf32, #tpu.memory_space<vmem>>, vector<8x16xf32>,
    %c1_84 = arith.constant 1 : index
    %c2_85 = arith.constant 2 : index
    %c0_86 = arith.constant 0 : index
    %100 = tpu.strided_load %arg8[%c1_84, %c2_85, %c0_86] {strides = array<i32: 2, 2, 1>} : memref<6x9x16xf32, #tpu.memory_space<vmem>>, vector<2x4x16xf32>
    %101 = vector.shape_cast %100 : vector<2x4x16xf32> to vector<8x16xf32>
    %c0_87 = arith.constant 0 : index
    %c80 = arith.constant 80 : index
    %102 = vector.load %arg10[%c0_87, %c80] : memref<8x144xf32, #tpu.memory_space<vmem>>, vector<8x16xf32>
    tpu.vector_store %arg10[%c0_87, %c80], %101 {strides = array<i32>} : memref<8x144xf32, #tpu.memory_space<vmem>>, vector<8x16xf32>,
    %c2_88 = arith.constant 2 : index
    %c0_89 = arith.constant 0 : index
    %c0_90 = arith.constant 0 : index
    %103 = tpu.strided_load %arg8[%c2_88, %c0_89, %c0_90] {strides = array<i32: 2, 2, 1>} : memref<6x9x16xf32, #tpu.memory_space<vmem>>, vector<2x4x16xf32>
    %104 = vector.shape_cast %103 : vector<2x4x16xf32> to vector<8x16xf32>
    %c0_91 = arith.constant 0 : index
    %c96 = arith.constant 96 : index
    %105 = vector.load %arg10[%c0_91, %c96] : memref<8x144xf32, #tpu.memory_space<vmem>>, vector<8x16xf32>
    tpu.vector_store %arg10[%c0_91, %c96], %104 {strides = array<i32>} : memref<8x144xf32, #tpu.memory_space<vmem>>, vector<8x16xf32>,
    %c2_92 = arith.constant 2 : index
    %c1_93 = arith.constant 1 : index
    %c0_94 = arith.constant 0 : index
    %106 = tpu.strided_load %arg8[%c2_92, %c1_93, %c0_94] {strides = array<i32: 2, 2, 1>} : memref<6x9x16xf32, #tpu.memory_space<vmem>>, vector<2x4x16xf32>
    %107 = vector.shape_cast %106 : vector<2x4x16xf32> to vector<8x16xf32>
    %c0_95 = arith.constant 0 : index
    %c112 = arith.constant 112 : index
    %108 = vector.load %arg10[%c0_95, %c112] : memref<8x144xf32, #tpu.memory_space<vmem>>, vector<8x16xf32>
    tpu.vector_store %arg10[%c0_95, %c112], %107 {strides = array<i32>} : memref<8x144xf32, #tpu.memory_space<vmem>>, vector<8x16xf32>,
    %c2_96 = arith.constant 2 : index
    %c2_97 = arith.constant 2 : index
    %c0_98 = arith.constant 0 : index
    %109 = tpu.strided_load %arg8[%c2_96, %c2_97, %c0_98] {strides = array<i32: 2, 2, 1>} : memref<6x9x16xf32, #tpu.memory_space<vmem>>, vector<2x4x16xf32>
    %110 = vector.shape_cast %109 : vector<2x4x16xf32> to vector<8x16xf32>
    %c0_99 = arith.constant 0 : index
    %c128 = arith.constant 128 : index
    %111 = vector.load %arg10[%c0_99, %c128] : memref<8x144xf32, #tpu.memory_space<vmem>>, vector<8x16xf32>
    tpu.vector_store %arg10[%c0_99, %c128], %110 {strides = array<i32>} : memref<8x144xf32, #tpu.memory_space<vmem>>, vector<8x16xf32>,
    %c0_100 = arith.constant 0 : index
    %c0_101 = arith.constant 0 : index
    %112 = vector.load %arg10[%c0_100, %c0_101] : memref<8x144xf32, #tpu.memory_space<vmem>>, vector<8x144xf32>
    %c0_102 = arith.constant 0 : index
    %c0_103 = arith.constant 0 : index
    %113 = vector.load %arg5[%c0_102, %c0_103] : memref<144x32xf32, #tpu.memory_space<vmem>>, vector<144x32xf32>
    %cst_104 = arith.constant dense<0.000000e+00> : vector<8x32xf32>
    %114 = tpu.matmul %112, %113, %cst_104 {dimension_numbers = #tpu.dot_dimension_numbers<[1], [0], [0], [1], [0, 0, 1, 1], [], []>} : vector<8x144xf32>, vector<144x32xf32>, vector<8x32xf32> -> vector<8x32xf32>
    %c0_105 = arith.constant 0 : index
    %c0_106 = arith.constant 0 : index
    %115 = vector.load %arg6[%c0_105, %c0_106] : memref<1x32xf32, #tpu.memory_space<vmem>>, vector<1x32xf32>
    %116 = vector.broadcast %115 : vector<1x32xf32> to vector<8x32xf32>
    %117 = arith.addf %114, %116 : vector<8x32xf32>
    %118 = vector.shape_cast %117 : vector<8x32xf32> to vector<2x4x32xf32>
    %c0_107 = arith.constant 0 : index
    %c0_108 = arith.constant 0 : index
    %c0_109 = arith.constant 0 : index
    %c0_110 = arith.constant 0 : index
    %119 = vector.load %arg7[%c0_107, %c0_108, %c0_109, %c0_110] : memref<1x2x4x32xf32, #tpu.memory_space<vmem>>, vector<1x2x4x32xf32>
    %120 = vector.shape_cast %119 : vector<1x2x4x32xf32> to vector<2x4x32xf32>
    %121 = vector.shape_cast %118 : vector<2x4x32xf32> to vector<1x2x4x32xf32>
    tpu.vector_store %arg7[%c0_107, %c0_108, %c0_109, %c0_110], %121 {strides = array<i32>} : memref<1x2x4x32xf32, #tpu.memory_space<vmem>>, vector<1x2x4x32xf32>,
    return
  }
  func.func @transform_0(%arg0: i32, %arg1: i32) -> (i32, i32, i32, i32) {
    %c0_i32 = arith.constant 0 : i32
    %c0_i32_0 = arith.constant 0 : i32
    %c0_i32_1 = arith.constant 0 : i32
    %c0_i32_2 = arith.constant 0 : i32
    return %arg0, %c0_i32, %c0_i32_0, %c0_i32_1 : i32, i32, i32, i32
  }
  func.func @transform_1(%arg0: i32, %arg1: i32) -> (i32, i32) {
    %c0_i32 = arith.constant 0 : i32
    %c0_i32_0 = arith.constant 0 : i32
    %c0_i32_1 = arith.constant 0 : i32
    return %c0_i32, %c0_i32_0 : i32, i32
  }
  func.func @transform_2(%arg0: i32, %arg1: i32) -> (i32, i32) {
    %c0_i32 = arith.constant 0 : i32
    %c0_i32_0 = arith.constant 0 : i32
    %c0_i32_1 = arith.constant 0 : i32
    return %c0_i32, %c0_i32_0 : i32, i32
  }
  func.func @transform_3(%arg0: i32, %arg1: i32) -> (i32, i32) {
    %c0_i32 = arith.constant 0 : i32
    %c0_i32_0 = arith.constant 0 : i32
    %c0_i32_1 = arith.constant 0 : i32
    return %c0_i32, %c0_i32_0 : i32, i32
  }
  func.func @transform_4(%arg0: i32, %arg1: i32) -> (i32, i32) {
    %c0_i32 = arith.constant 0 : i32
    %c0_i32_0 = arith.constant 0 : i32
    %c0_i32_1 = arith.constant 0 : i32
    return %c0_i32, %c0_i32_0 : i32, i32
  }
  func.func @transform_5(%arg0: i32, %arg1: i32) -> (i32, i32, i32, i32) {
    %c0_i32 = arith.constant 0 : i32
    %c0_i32_0 = arith.constant 0 : i32
    %c0_i32_1 = arith.constant 0 : i32
    return %arg0, %arg1, %c0_i32, %c0_i32_0 : i32, i32, i32, i32
  }
}

</mosaic_0001>

<llo_original>
// kernel: patch_embed_forward.1
$region0: #{patch_embed_forward.1}
  #allocation0 [shape = 'u32[]', space=smem, size = 0x4, offset = 0x4, fixed_abs, tag = 'smem constant byte address 0x4 - core index']
  #allocation1 [shape = 'u32[144,128]{1,0:T(1,128)}', space=vmem, size = 0x12000, scoped, tag = 'internal scratch']
  #allocation2 [shape = 'f32[6,9,16]{2,1,0:T(8,128)}', space=vmem, size = 0xc000, scoped, tag = 'scratch operand']
  #allocation3 [shape = 'f32[40,64]{1,0:T(8,128)}', space=vmem, size = 0x5000, scoped, tag = 'scratch operand']
  #allocation4 [shape = 'f32[8,144]{1,0:T(8,128)}', space=vmem, size = 0x2000, scoped, tag = 'scratch operand']
  %s0 = inlined_call_operand.vmem [shape: f32[2,10,9,16], index: 0, kind: input, shape index: {}]
  %s1 = inlined_call_operand.vmem [shape: f32[64,16], index: 1, kind: input, shape index: {}]
  %s2 = inlined_call_operand.vmem [shape: f32[1,16], index: 2, kind: input, shape index: {}]
  %s3 = inlined_call_operand.vmem [shape: f32[144,32], index: 3, kind: input, shape index: {}]
  %s4 = inlined_call_operand.vmem [shape: f32[1,32], index: 4, kind: input, shape index: {}]
  %s5 = inlined_call_operand.hbm [shape: f32[2,4,4,32], index: 5, kind: output, shape index: {}]
  %s6 = sld [smem:[#allocation0]]
  $region53: #{patch_embed_forward.1} parent=0
    _
  %s8 = ssub.s32 1, %s6
  %s9 = scalar_select 0, %s8, %s6
  $region1: #{patch_embed_forward.1} parent=0
    #allocation5 [shape = 'u8[8192]{0}', space=vmem, size = 0x2000, scoped, tag = 'output window, operand 0']
    #allocation6 [shape = 's32[2]{0}', space=sflag, size = 0x8, scoped, tag = 'scoped memory for patch_embed_forward.1']
    %10 = vsyncpa [#allocation6], 0
    %s11 = scalar_lea.sflag [#allocation6], 1
    %12 = vsyncpa %s11, 0
    loop: start=0, step=1, limit=6
    $region2: #{patch_embed_forward.1} parent=1 // loop_pre_header
      _
    $region3: #{patch_embed_forward.1} parent=1 // loop_header
      %s14 = sphi 0, %s18
      %p15 = scmp.ge.s32.totalorder %s14, 6
      %s21 = sphi 0, %s33
      %s22 = sphi 0, %s29
      %s23 = sphi 0, %s21
      %s24 = sphi 0, %s22
      %s25 = sphi 0, %s23
      %s26 = sphi 0, %s24
      %s36 = sphi 0, %s38
      %s39 = sphi 0, %s36
      %s40 = sphi 0, %s39
      %s56 = sphi 0, %s40
      %s60 = sphi 0, %s60
      %s62 = sphi 0, %s60
      %s63 = sphi 0, %s62
      %s77 = sphi 0, %s63
      %s81 = sphi 0, %s81
      %s83 = sphi 0, %s81
      %s84 = sphi 0, %s83
      %s98 = sphi 0, %s84
      %s102 = sphi 0, %s102
      %s104 = sphi 0, %s102
      %s105 = sphi 0, %s104
      %s119 = sphi 0, %s105
      %s123 = sphi 0, %s123
      %s125 = sphi 0, %s123
      %s126 = sphi 0, %s125
      %s140 = sphi 0, %s126
      %s148 = sphi 0, %s150
      %s151 = sphi 0, %s148
      %s152 = sphi 0, %s151
      %s168 = sphi 0, %s152
    $region4: #{patch_embed_forward.1} parent=1 // loop_header_branch
      %17 = sbr.rel (%p15) target = $region8
    $region5: #{patch_embed_forward.1} parent=1 // loop_body
      %s19 = ssub.s32 %s14, 1
      %s20 = ssub.s32 %s14, 2
      %s27 = sadd.s32 1, %s22
      %p28 = scmp.ge.s32.totalorder %s27, 2
      %s29 = scalar_select %p28, 0, %s27
      %s30 = sadd.s32 1, %s21
      %s31 = scalar_select %p28, %s30, %s21
      %p32 = scmp.ge.s32.totalorder %s31, 2
      %s33 = scalar_select %p32, 0, %s31
      %s34 = ssub.s32 %s21, %s33
      %p35 = scmp.eq.s32.totalorder %s34, 0
      %s37 = sadd.s32 %s36, 1
      %s38 = scalar_select %p35, %s36, %s37
      %p41 = pneg %p35
      %p42 = scmp.eq.s32.totalorder %s14, 3
      %p43 = por %p41, %p42
      %p44 = scmp.ne.s32.totalorder %s36, %s39
      %p45 = scmp.eq.s32.totalorder %s14, 0
      %p46 = por %p44, %p45
      %p47 = scmp.ne.s32.totalorder %s36, %s39
      %p48 = scmp.eq.s32.totalorder %s19, 3
      %p49 = por %p47, %p48
      %p50 = scmp.ne.s32.totalorder %s39, %s40
      %p51 = scmp.eq.s32.totalorder %s19, 0
      %p52 = por %p50, %p51
      %p53 = scmp.ne.s32.totalorder %s39, %s40
      %p54 = scmp.eq.s32.totalorder %s20, 3
      %p55 = por %p53, %p54
      %p57 = scmp.ne.s32.totalorder %s40, %s56
      %p58 = scmp.eq.s32.totalorder %s20, 0
      %p59 = por %p57, %p58
      %s61 = sadd.s32 %s60, 1
      %p64 = scmp.eq.s32.totalorder %s14, 3
      %p65 = scmp.ne.s32.totalorder %s60, %s62
      %p66 = scmp.eq.s32.totalorder %s14, 0
      %p67 = por %p65, %p66
      %p68 = scmp.ne.s32.totalorder %s60, %s62
      %p69 = scmp.eq.s32.totalorder %s19, 3
      %p70 = por %p68, %p69
      %p71 = scmp.ne.s32.totalorder %s62, %s63
      %p72 = scmp.eq.s32.totalorder %s19, 0
      %p73 = por %p71, %p72
      %p74 = scmp.ne.s32.totalorder %s62, %s63
      %p75 = scmp.eq.s32.totalorder %s20, 3
      %p76 = por %p74, %p75
      %p78 = scmp.ne.s32.totalorder %s63, %s77
      %p79 = scmp.eq.s32.totalorder %s20, 0
      %p80 = por %p78, %p79
      %s82 = sadd.s32 %s81, 1
      %p85 = scmp.eq.s32.totalorder %s14, 3
      %p86 = scmp.ne.s32.totalorder %s81, %s83
      %p87 = scmp.eq.s32.totalorder %s14, 0
      %p88 = por %p86, %p87
      %p89 = scmp.ne.s32.totalorder %s81, %s83
      %p90 = scmp.eq.s32.totalorder %s19, 3
      %p91 = por %p89, %p90
      %p92 = scmp.ne.s32.totalorder %s83, %s84
      %p93 = scmp.eq.s32.totalorder %s19, 0
      %p94 = por %p92, %p93
      %p95 = scmp.ne.s32.totalorder %s83, %s84
      %p96 = scmp.eq.s32.totalorder %s20, 3
      %p97 = por %p95, %p96
      %p99 = scmp.ne.s32.totalorder %s84, %s98
      %p100 = scmp.eq.s32.totalorder %s20, 0
      %p101 = por %p99, %p100
      %s103 = sadd.s32 %s102, 1
      %p106 = scmp.eq.s32.totalorder %s14, 3
      %p107 = scmp.ne.s32.totalorder %s102, %s104
      %p108 = scmp.eq.s32.totalorder %s14, 0
      %p109 = por %p107, %p108
      %p110 = scmp.ne.s32.totalorder %s102, %s104
      %p111 = scmp.eq.s32.totalorder %s19, 3
      %p112 = por %p110, %p111
      %p113 = scmp.ne.s32.totalorder %s104, %s105
      %p114 = scmp.eq.s32.totalorder %s19, 0
      %p115 = por %p113, %p114
      %p116 = scmp.ne.s32.totalorder %s104, %s105
      %p117 = scmp.eq.s32.totalorder %s20, 3
      %p118 = por %p116, %p117
      %p120 = scmp.ne.s32.totalorder %s105, %s119
      %p121 = scmp.eq.s32.totalorder %s20, 0
      %p122 = por %p120, %p121
      %s124 = sadd.s32 %s123, 1
      %p127 = scmp.eq.s32.totalorder %s14, 3
      %p128 = scmp.ne.s32.totalorder %s123, %s125
      %p129 = scmp.eq.s32.totalorder %s14, 0
      %p130 = por %p128, %p129
      %p131 = scmp.ne.s32.totalorder %s123, %s125
      %p132 = scmp.eq.s32.totalorder %s19, 3
      %p133 = por %p131, %p132
      %p134 = scmp.ne.s32.totalorder %s125, %s126
      %p135 = scmp.eq.s32.totalorder %s19, 0
      %p136 = por %p134, %p135
      %p137 = scmp.ne.s32.totalorder %s125, %s126
      %p138 = scmp.eq.s32.totalorder %s20, 3
      %p139 = por %p137, %p138
      %p141 = scmp.ne.s32.totalorder %s126, %s140
      %p142 = scmp.eq.s32.totalorder %s20, 0
      %p143 = por %p141, %p142
      %s144 = ssub.s32 %s21, %s33
      %s145 = ssub.s32 %s22, %s29
      %s146 = sor.u32 %s144, %s145
      %p147 = scmp.eq.s32.totalorder %s146, 0
      %s149 = sadd.s32 %s148, 1
      %s150 = scalar_select %p147, %s148, %s149
      %p153 = pneg %p147
      %p154 = scmp.eq.s32.totalorder %s14, 3
      %p155 = por %p153, %p154
      %p156 = scmp.ne.s32.totalorder %s148, %s151
      %p157 = scmp.eq.s32.totalorder %s14, 0
      %p158 = por %p156, %p157
      %p159 = scmp.ne.s32.totalorder %s148, %s151
      %p160 = scmp.eq.s32.totalorder %s19, 3
      %p161 = por %p159, %p160
      %p162 = scmp.ne.s32.totalorder %s151, %s152
      %p163 = scmp.eq.s32.totalorder %s19, 0
      %p164 = por %p162, %p163
      %p165 = scmp.ne.s32.totalorder %s151, %s152
      %p166 = scmp.eq.s32.totalorder %s20, 3
      %p167 = por %p165, %p166
      %p169 = scmp.ne.s32.totalorder %s152, %s168
      %p170 = scmp.eq.s32.totalorder %s20, 0
      %p171 = por %p169, %p170
      %p172 = scmp.le.s32.totalorder 1, %s14
      %p173 = scmp.lt.s32.totalorder %s14, 5
      %p174 = pnand %p172, %p173
      %p175 = pneg %p174
      // Predicated region
      $region9: #{patch_embed_forward.1} parent=5 // pred_check
        _
      $region10: #{patch_embed_forward.1} parent=5 // pred_check_branch
        %177 = sbr.rel (%p174) target = $region12
      $region11: #{patch_embed_forward.1} parent=5 // pred_region
        %s178 = ssub.s32 %s14, 1
        // Predicated region
        $region13: #{patch_embed_forward.1} parent=11 // pred_check
          %p179 = pneg %p73
        $region14: #{patch_embed_forward.1} parent=11 // pred_check_branch
          %181 = sbr.rel (%p179) target = $region16
        $region15: #{patch_embed_forward.1} parent=11 // pred_region
          _
        $region16: #{patch_embed_forward.1} parent=11 // pred_fallthru
          _
        // Predicated region
        $region17: #{patch_embed_forward.1} parent=11 // pred_check
          %p182 = pneg %p94
        $region18: #{patch_embed_forward.1} parent=11 // pred_check_branch
          %184 = sbr.rel (%p182) target = $region20
        $region19: #{patch_embed_forward.1} parent=11 // pred_region
          _
        $region20: #{patch_embed_forward.1} parent=11 // pred_fallthru
          _
        // Predicated region
        $region21: #{patch_embed_forward.1} parent=11 // pred_check
          %p185 = pneg %p115
        $region22: #{patch_embed_forward.1} parent=11 // pred_check_branch
          %187 = sbr.rel (%p185) target = $region24
        $region23: #{patch_embed_forward.1} parent=11 // pred_region
          _
        $region24: #{patch_embed_forward.1} parent=11 // pred_fallthru
          _
        // Predicated region
        $region25: #{patch_embed_forward.1} parent=11 // pred_check
          %p188 = pneg %p136
        $region26: #{patch_embed_forward.1} parent=11 // pred_check_branch
          %190 = sbr.rel (%p188) target = $region28
        $region27: #{patch_embed_forward.1} parent=11 // pred_region
          _
        $region28: #{patch_embed_forward.1} parent=11 // pred_fallthru
          _
      $region12: #{patch_embed_forward.1} parent=5 // pred_fallthru
        _
      %p191 = scmp.lt.s32.totalorder %s14, 4
      // Predicated region
      $region29: #{patch_embed_forward.1} parent=5 // pred_check
        %p192 = pneg %p191
      $region30: #{patch_embed_forward.1} parent=5 // pred_check_branch
        %194 = sbr.rel (%p192) target = $region32
      $region31: #{patch_embed_forward.1} parent=5 // pred_region
        // Predicated region
        $region33: #{patch_embed_forward.1} parent=31 // pred_check
          %p195 = pneg %p46
        $region34: #{patch_embed_forward.1} parent=31 // pred_check_branch
          %197 = sbr.rel (%p195) target = $region36
        $region35: #{patch_embed_forward.1} parent=31 // pred_region
          %p198 = scmp.lt.s32.totalorder %s21, 1
          %s199 = scalar_select %p198, %s21, 1
          %s200 = smul.addr %s199, 20
          %s201 = smul.addr %s200, 8
          %s202 = scalar_lea.vmem %s0, %s201
        $region36: #{patch_embed_forward.1} parent=31 // pred_fallthru
          _
      $region32: #{patch_embed_forward.1} parent=5 // pred_fallthru
        _
      %p203 = scmp.le.s32.totalorder 1, %s14
      %p204 = scmp.lt.s32.totalorder %s14, 5
      %p205 = pnand %p203, %p204
      %p206 = pneg %p205
      // Predicated region
      $region37: #{patch_embed_forward.1} parent=5 // pred_check
        _
      $region38: #{patch_embed_forward.1} parent=5 // pred_check_branch
        %208 = sbr.rel (%p205) target = $region40
      $region39: #{patch_embed_forward.1} parent=5 // pred_region
        %s209 = ssub.s32 %s14, 1
        %p210 = scmp.lt.s32.totalorder %s23, 1
        %s211 = scalar_select %p210, %s23, 1
        %s212 = smul.addr %s211, 20
        %s213 = smul.addr %s212, 8
        %s214 = scalar_lea.vmem %s0, %s213
        %p215 = pneg %p52
        %p216 = pneg %p49
        %p217 = pneg %p73
        %p218 = pneg %p70
        %p219 = pneg %p94
        %p220 = pneg %p91
        %p221 = pneg %p115
        %p222 = pneg %p112
        %p223 = pneg %p136
        %p224 = pneg %p133
        %p225 = pneg %p164
        %p226 = pneg %p161
        %s227 = sand.u32 %s151, 1
        %s228 = scalar_lea.sflag [#allocation6], %s227
        %s229 = sand.u32 %s151, 1
        %s230 = smul.addr %s229, 8
        %s231 = scalar_lea.vmem [#allocation5], %s230
        %p232 = scmp.lt.s32.totalorder %s23, 1
        %s233 = scalar_select %p232, %s23, 1
        %s234 = smul.addr %s233, 20
        %s235 = smul.addr %s234, 8
        %s236 = scalar_lea.vmem %s0, %s235
        %s237 = smul.u32 2, %s24
        %p238 = scmp.eq.s32.totalorder %s24, 0
        %s239 = scalar_select %p238, 1, 0
        %s240 = smul.u32 %s24, 4
        %s241 = ssub.s32 %s240, 1
        %s242 = sadd.s32 %s241, %s239
        %vm243 = vcmask 130048
        %244 = vst.msk [vmem:[#allocation2] sm:$0xff] %vm243, 0.0
        %vm245 = vcmask 122880
        %246 = vst.msk [vmem:[#allocation2 + $0x8] sm:$0x1] %vm245, 0.0
        %247 = vst.msk [vmem:[#allocation2 + $0x10] sm:$0xff] %vm243, 0.0
        %248 = vst.msk [vmem:[#allocation2 + $0x18] sm:$0x1] %vm245, 0.0
        %249 = vst.msk [vmem:[#allocation2 + $0x20] sm:$0xff] %vm243, 0.0
        %250 = vst.msk [vmem:[#allocation2 + $0x28] sm:$0x1] %vm245, 0.0
        %251 = vst.msk [vmem:[#allocation2 + $0x30] sm:$0xff] %vm243, 0.0
        %252 = vst.msk [vmem:[#allocation2 + $0x38] sm:$0x1] %vm245, 0.0
        %253 = vst.msk [vmem:[#allocation2 + $0x40] sm:$0xff] %vm243, 0.0
        %254 = vst.msk [vmem:[#allocation2 + $0x48] sm:$0x1] %vm245, 0.0
        %255 = vst.msk [vmem:[#allocation2 + $0x50] sm:$0xff] %vm243, 0.0
        %256 = vst.msk [vmem:[#allocation2 + $0x58] sm:$0x1] %vm245, 0.0
        %s257 = smul.u32 %s242, 16
        %s258 = scalar_lea.vmem %s236, %s257
        %v259 = vld [vmem:[%s258] sm:$0xff]
        %v260 = vld [vmem:[%s258 + $0x10] sm:$0xff]
        %v261 = vld [vmem:[%s258 + $0x20] sm:$0xff]
        %v262 = vld [vmem:[%s258 + $0x30] sm:$0xff]
        %v263 = vld [vmem:[%s258 + $0x40] sm:$0xff]
        %264 = vst.msk [vmem:[#allocation3] sm:$0xff] %vm243, %v259
        %265 = vst.msk [vmem:[#allocation3 + $0x8] sm:$0xff] %vm243, %v260
        %266 = vst.msk [vmem:[#allocation3 + $0x10] sm:$0xff] %vm243, %v261
        %267 = vst.msk [vmem:[#allocation3 + $0x18] sm:$0xff] %vm243, %v262
        %268 = vst.msk [vmem:[#allocation3 + $0x20] sm:$0xff] %vm243, %v263
        %v269 = vld [vmem:[%s258 + $0x1] sm:$0xff]
        %v270 = vld [vmem:[%s258 + $0x11] sm:$0xff]
        %v271 = vld [vmem:[%s258 + $0x21] sm:$0xff]
        %v272 = vld [vmem:[%s258 + $0x31] sm:$0xff]
        %v273 = vld [vmem:[%s258 + $0x41] sm:$0xff]
        %279 = vrot.lane.b32.xlu0 %v269, 16
        %v280 = vpop.permute.xlu0 %279
        %281 = vrot.lane.b32.xlu0 %v270, 16
        %v282 = vpop.permute.xlu0 %281
        %283 = vrot.lane.b32.xlu0 %v271, 16
        %v284 = vpop.permute.xlu0 %283
        %285 = vrot.lane.b32.xlu0 %v272, 16
        %v286 = vpop.permute.xlu0 %285
        %287 = vrot.lane.b32.xlu0 %v273, 16
        %v288 = vpop.permute.xlu0 %287
        %vm294 = vcmask 261248
        %295 = vst.msk [vmem:[#allocation3] sm:$0xff] %vm294, %v280
        %296 = vst.msk [vmem:[#allocation3 + $0x8] sm:$0xff] %vm294, %v282
        %297 = vst.msk [vmem:[#allocation3 + $0x10] sm:$0xff] %vm294, %v284
        %298 = vst.msk [vmem:[#allocation3 + $0x18] sm:$0xff] %vm294, %v286
        %299 = vst.msk [vmem:[#allocation3 + $0x20] sm:$0xff] %vm294, %v288
        %s300 = sadd.s32 %s242, 1
        %s301 = smul.u32 %s300, 16
        %s302 = scalar_lea.vmem %s236, %s301
        %v303 = vld [vmem:[%s302] sm:$0xff]
        %v304 = vld [vmem:[%s302 + $0x10] sm:$0xff]
        %v305 = vld [vmem:[%s302 + $0x20] sm:$0xff]
        %v306 = vld [vmem:[%s302 + $0x30] sm:$0xff]
        %v307 = vld [vmem:[%s302 + $0x40] sm:$0xff]
        %313 = vrot.lane.b32.xlu0 %v303, 32
        %v314 = vpop.permute.xlu0 %313
        %315 = vrot.lane.b32.xlu0 %v304, 32
        %v316 = vpop.permute.xlu0 %315
        %317 = vrot.lane.b32.xlu0 %v305, 32
        %v318 = vpop.permute.xlu0 %317
        %319 = vrot.lane.b32.xlu0 %v306, 32
        %v320 = vpop.permute.xlu0 %319
        %321 = vrot.lane.b32.xlu0 %v307, 32
        %v322 = vpop.permute.xlu0 %321
        %vm328 = vcmask 392448
        %329 = vst.msk [vmem:[#allocation3] sm:$0xff] %vm328, %v314
        %330 = vst.msk [vmem:[#allocation3 + $0x8] sm:$0xff] %vm328, %v316
        %331 = vst.msk [vmem:[#allocation3 + $0x10] sm:$0xff] %vm328, %v318
        %332 = vst.msk [vmem:[#allocation3 + $0x18] sm:$0xff] %vm328, %v320
        %333 = vst.msk [vmem:[#allocation3 + $0x20] sm:$0xff] %vm328, %v322
        %v334 = vld [vmem:[%s302 + $0x1] sm:$0xff]
        %v335 = vld [vmem:[%s302 + $0x11] sm:$0xff]
        %v336 = vld [vmem:[%s302 + $0x21] sm:$0xff]
        %v337 = vld [vmem:[%s302 + $0x31] sm:$0xff]
        %v338 = vld [vmem:[%s302 + $0x41] sm:$0xff]
        %344 = vrot.lane.b32.xlu0 %v334, 48
        %v345 = vpop.permute.xlu0 %344
        %346 = vrot.lane.b32.xlu0 %v335, 48
        %v347 = vpop.permute.xlu0 %346
        %348 = vrot.lane.b32.xlu0 %v336, 48
        %v349 = vpop.permute.xlu0 %348
        %350 = vrot.lane.b32.xlu0 %v337, 48
        %v351 = vpop.permute.xlu0 %350
        %352 = vrot.lane.b32.xlu0 %v338, 48
        %v353 = vpop.permute.xlu0 %352
        %vm359 = vcmask 523648
        %360 = vst.msk [vmem:[#allocation3] sm:$0xff] %vm359, %v345
        %361 = vst.msk [vmem:[#allocation3 + $0x8] sm:$0xff] %vm359, %v347
        %362 = vst.msk [vmem:[#allocation3 + $0x10] sm:$0xff] %vm359, %v349
        %363 = vst.msk [vmem:[#allocation3 + $0x18] sm:$0xff] %vm359, %v351
        %364 = vst.msk [vmem:[#allocation3 + $0x20] sm:$0xff] %vm359, %v353
        %v365 = vld [vmem:[#allocation3] sm:$0xff]
        %v366 = vld [vmem:[#allocation3 + $0x8] sm:$0xff]
        %v367 = vld [vmem:[#allocation3 + $0x10] sm:$0xff]
        %v368 = vld [vmem:[#allocation3 + $0x18] sm:$0xff]
        %v369 = vld [vmem:[#allocation3 + $0x20] sm:$0xff]
        %v370 = vld [vmem:[%s1] sm:$0xff]
        %v371 = vld [vmem:[%s1 + $0x8] sm:$0xff]
        %v372 = vld [vmem:[%s1 + $0x10] sm:$0xff]
        %v373 = vld [vmem:[%s1 + $0x18] sm:$0xff]
        %v374 = vld [vmem:[%s1 + $0x20] sm:$0xff]
        %v375 = vld [vmem:[%s1 + $0x28] sm:$0xff]
        %v376 = vld [vmem:[%s1 + $0x30] sm:$0xff]
        %v377 = vld [vmem:[%s1 + $0x38] sm:$0xff]
        %v378 = vld [vmem:[%s2] sm:$0x1]
        %v380 = vlaneseq
        %v381 = vshrl.u32 %v380, 7
        %v382 = vsub.s32 0, %v381
        %v383 = vrot.slane %v378, %v382
        %vm385 = vcmask 523264
        %v387 = vsel %vm385, %v365, 0
        %v390 = vsel %vm385, %v366, 0
        %v393 = vsel %vm385, %v367, 0
        %v396 = vsel %vm385, %v368, 0
        %v399 = vsel %vm385, %v369, 0
        %401 = vmatprep.subr.mxu0 0.0
        %402 = vmatpush1.msra.mxu0 0.0
        %403 = vmatprep.subr.mxu0 0.0
        %404 = vmatpush1.msra.mxu0 0.0
        %405 = vmatprep.subr.mxu0 0.0
        %406 = vmatpush1.msra.mxu0 0.0
        %407 = vmatprep.subr.mxu0 0.0
        %408 = vmatpush1.msra.mxu0 0.0
        %409 = vmatprep.subr.mxu0 0.0
        %410 = vmatpush1.msra.mxu0 0.0
        %411 = vmatprep.subr.mxu0 0.0
        %412 = vmatpush1.msra.mxu0 0.0
        %413 = vmatprep.subr.mxu0 0.0
        %414 = vmatpush1.msra.mxu0 0.0
        %415 = vmatprep.subr.mxu0 0.0
        %416 = vmatpush1.msra.mxu0 0.0
        %417 = vmatprep.subr.mxu0 0.0
        %418 = vmatpush1.msra.mxu0 %v377
        %419 = vmatprep.subr.mxu0 0.0
        %420 = vmatpush1.msra.mxu0 %v376
        %421 = vmatprep.subr.mxu0 0.0
        %422 = vmatpush1.msra.mxu0 %v375
        %423 = vmatprep.subr.mxu0 0.0
        %424 = vmatpush1.msra.mxu0 %v374
        %425 = vmatprep.subr.mxu0 0.0
        %426 = vmatpush1.msra.mxu0 %v373
        %427 = vmatprep.subr.mxu0 0.0
        %428 = vmatpush1.msra.mxu0 %v372
        %429 = vmatprep.subr.mxu0 0.0
        %430 = vmatpush1.msra.mxu0 %v371
        %431 = vmatprep.subr.mxu0 0.0
        %432 = vmatpush1.msra.mxu0 %v370
        %433 = vmatprep.subr.mxu0 0.0
        %434 = vmatpush2.msra.mxu0 0.0
        %435 = vmatprep.subr.mxu0 0.0
        %436 = vmatpush2.msra.mxu0 0.0
        %437 = vmatprep.subr.mxu0 0.0
        %438 = vmatpush2.msra.mxu0 0.0
        %439 = vmatprep.subr.mxu0 0.0
        %440 = vmatpush2.msra.mxu0 0.0
        %441 = vmatprep.subr.mxu0 0.0
        %442 = vmatpush2.msra.mxu0 0.0
        %443 = vmatprep.subr.mxu0 0.0
        %444 = vmatpush2.msra.mxu0 0.0
        %445 = vmatprep.subr.mxu0 0.0
        %446 = vmatpush2.msra.mxu0 0.0
        %447 = vmatprep.subr.mxu0 0.0
        %448 = vmatpush2.msra.mxu0 0.0
        %449 = vmatprep.subr.mxu0 0.0
        %450 = vmatpush2.msra.mxu0 0.0
        %451 = vmatprep.subr.mxu0 0.0
        %452 = vmatpush2.msra.mxu0 0.0
        %453 = vmatprep.subr.mxu0 0.0
        %454 = vmatpush2.msra.mxu0 0.0
        %455 = vmatprep.subr.mxu0 0.0
        %456 = vmatpush2.msra.mxu0 0.0
        %457 = vmatprep.subr.mxu0 0.0
        %458 = vmatpush2.msra.mxu0 0.0
        %459 = vmatprep.subr.mxu0 0.0
        %460 = vmatpush2.msra.mxu0 0.0
        %461 = vmatprep.subr.mxu0 0.0
        %462 = vmatpush2.msra.mxu0 0.0
        %463 = vmatprep.subr.mxu0 0.0
        %464 = vmatpush2.msra.mxu0 0.0
        %465 = vmatprep.mubr.f32.mxu0 0.0
        %466 = vmatmul.mubr.f32.gmra.mxu0 %v387
        %v467 = vpop.f32.mrf.mxu0
        %v468 = vadd.f32 %v383, %v467
        %v469 = vpop.f32.mrf.mxu0
        %470 = vmatprep.mubr.f32.mxu0 0.0
        %471 = vmatmul.mubr.f32.gmra.mxu0 %v390
        %v472 = vpop.f32.mrf.mxu0
        %v473 = vadd.f32 %v383, %v472
        %v474 = vpop.f32.mrf.mxu0
        %475 = vmatprep.mubr.f32.mxu0 0.0
        %476 = vmatmul.mubr.f32.gmra.mxu0 %v393
        %v477 = vpop.f32.mrf.mxu0
        %v478 = vadd.f32 %v383, %v477
        %v479 = vpop.f32.mrf.mxu0
        %480 = vmatprep.mubr.f32.mxu0 0.0
        %481 = vmatmul.mubr.f32.gmra.mxu0 %v396
        %v482 = vpop.f32.mrf.mxu0
        %v483 = vadd.f32 %v383, %v482
        %v484 = vpop.f32.mrf.mxu0
        %485 = vmatprep.mubr.f32.mxu0 0.0
        %486 = vmatmul.mubr.f32.gmra.mxu0 %v399
        %v487 = vpop.f32.mrf.mxu0
        %v488 = vadd.f32 %v383, %v487
        %v489 = vpop.f32.mrf.mxu0
        %490 = vdwg.mxu0
        %v491 = vmul.f32 %v468, 0.5
        %v492 = vmul.f32 %v473, 0.5
        %v493 = vmul.f32 %v478, 0.5
        %v494 = vmul.f32 %v483, 0.5
        %v495 = vmul.f32 %v488, 0.5
        %v496 = vmul.f32 %v468, 0.70710677
        %v497 = vmul.f32 %v473, 0.70710677
        %v498 = vmul.f32 %v478, 0.70710677
        %v499 = vmul.f32 %v483, 0.70710677
        %v500 = vmul.f32 %v488, 0.70710677
        %v501 = vand.u32 2147483647, %v496
        %v502 = vand.u32 2147483647, %v497
        %v503 = vand.u32 2147483647, %v498
        %v504 = vand.u32 2147483647, %v499
        %v505 = vand.u32 2147483647, %v500
        %v506 = vmul.f32 %v501, 0.3275911
        %v507 = vmul.f32 %v502, 0.3275911
        %v508 = vmul.f32 %v503, 0.3275911
        %v509 = vmul.f32 %v504, 0.3275911
        %v510 = vmul.f32 %v505, 0.3275911
        %v511 = vadd.f32 %v506, 1.0
        %v512 = vadd.f32 %v507, 1.0
        %v513 = vadd.f32 %v508, 1.0
        %v514 = vadd.f32 %v509, 1.0
        %v515 = vadd.f32 %v510, 1.0
        %v516 = vrcp.pop %v511
        %v517 = vmul.f32 1.0, %v516
        %v518 = vrcp.pop %v512
        %v519 = vmul.f32 1.0, %v518
        %v520 = vrcp.pop %v513
        %v521 = vmul.f32 1.0, %v520
        %v522 = vrcp.pop %v514
        %v523 = vmul.f32 1.0, %v522
        %v524 = vrcp.pop %v515
        %v525 = vmul.f32 1.0, %v524
        %v526 = vmul.f32 %v517, 1.0614054
        %v527 = vmul.f32 %v519, 1.0614054
        %v528 = vmul.f32 %v521, 1.0614054
        %v529 = vmul.f32 %v523, 1.0614054
        %v530 = vmul.f32 %v525, 1.0614054
        %v531 = vadd.f32 %v526, -1.4531521
        %v532 = vadd.f32 %v527, -1.4531521
        %v533 = vadd.f32 %v528, -1.4531521
        %v534 = vadd.f32 %v529, -1.4531521
        %v535 = vadd.f32 %v530, -1.4531521
        %v536 = vmul.f32 %v531, %v517
        %v537 = vmul.f32 %v532, %v519
        %v538 = vmul.f32 %v533, %v521
        %v539 = vmul.f32 %v534, %v523
        %v540 = vmul.f32 %v535, %v525
        %v541 = vadd.f32 %v536, 1.4214138
        %v542 = vadd.f32 %v537, 1.4214138
        %v543 = vadd.f32 %v538, 1.4214138
        %v544 = vadd.f32 %v539, 1.4214138
        %v545 = vadd.f32 %v540, 1.4214138
        %v546 = vmul.f32 %v541, %v517
        %v547 = vmul.f32 %v542, %v519
        %v548 = vmul.f32 %v543, %v521
        %v549 = vmul.f32 %v544, %v523
        %v550 = vmul.f32 %v545, %v525
        %v551 = vadd.f32 %v546, -0.28449672
        %v552 = vadd.f32 %v547, -0.28449672
        %v553 = vadd.f32 %v548, -0.28449672
        %v554 = vadd.f32 %v549, -0.28449672
        %v555 = vadd.f32 %v550, -0.28449672
        %v556 = vmul.f32 %v551, %v517
        %v557 = vmul.f32 %v552, %v519
        %v558 = vmul.f32 %v553, %v521
        %v559 = vmul.f32 %v554, %v523
        %v560 = vmul.f32 %v555, %v525
        %v561 = vadd.f32 %v556, 0.2548296
        %v562 = vadd.f32 %v557, 0.2548296
        %v563 = vadd.f32 %v558, 0.2548296
        %v564 = vadd.f32 %v559, 0.2548296
        %v565 = vadd.f32 %v560, 0.2548296
        %v566 = vmul.f32 %v561, %v517
        %v567 = vmul.f32 %v562, %v519
        %v568 = vmul.f32 %v563, %v521
        %v569 = vmul.f32 %v564, %v523
        %v570 = vmul.f32 %v565, %v525
        %v571 = vsub.f32 0.0, %v501
        %v572 = vsub.f32 0.0, %v502
        %v573 = vsub.f32 0.0, %v503
        %v574 = vsub.f32 0.0, %v504
        %v575 = vsub.f32 0.0, %v505
        %v576 = vmul.f32 %v571, %v501
        %v577 = vmul.f32 %v572, %v502
        %v578 = vmul.f32 %v573, %v503
        %v579 = vmul.f32 %v574, %v504
        %v580 = vmul.f32 %v575, %v505
        %v581 = vmul.f32 %v576, 1.442695
        %v582 = vpow.pop %v581
        %v583 = vmul.f32 %v577, 1.442695
        %v584 = vpow.pop %v583
        %v585 = vmul.f32 %v578, 1.442695
        %v586 = vpow.pop %v585
        %v587 = vmul.f32 %v579, 1.442695
        %v588 = vpow.pop %v587
        %v589 = vmul.f32 %v580, 1.442695
        %v590 = vpow.pop %v589
        %v591 = vmul.f32 %v566, %v582
        %v592 = vmul.f32 %v567, %v584
        %v593 = vmul.f32 %v568, %v586
        %v594 = vmul.f32 %v569, %v588
        %v595 = vmul.f32 %v570, %v590
        %v596 = vsub.f32 1.0, %v591
        %v597 = vsub.f32 1.0, %v592
        %v598 = vsub.f32 1.0, %v593
        %v599 = vsub.f32 1.0, %v594
        %v600 = vsub.f32 1.0, %v595
        %vm601 = vcmp.lt.f32.partialorder %v496, 0.0
        %vm602 = vcmp.lt.f32.partialorder %v497, 0.0
        %vm603 = vcmp.lt.f32.partialorder %v498, 0.0
        %vm604 = vcmp.lt.f32.partialorder %v499, 0.0
        %vm605 = vcmp.lt.f32.partialorder %v500, 0.0
        %v606 = vsub.f32 0.0, %v596
        %v607 = vsub.f32 0.0, %v597
        %v608 = vsub.f32 0.0, %v598
        %v609 = vsub.f32 0.0, %v599
        %v610 = vsub.f32 0.0, %v600
        %v611 = vsel %vm601, %v606, %v596
        %v612 = vsel %vm602, %v607, %v597
        %v613 = vsel %vm603, %v608, %v598
        %v614 = vsel %vm604, %v609, %v599
        %v615 = vsel %vm605, %v610, %v600
        %v616 = vadd.f32 %v611, 1.0
        %v617 = vadd.f32 %v612, 1.0
        %v618 = vadd.f32 %v613, 1.0
        %v619 = vadd.f32 %v614, 1.0
        %v620 = vadd.f32 %v615, 1.0
        %v621 = vmul.f32 %v491, %v616
        %v622 = vmul.f32 %v492, %v617
        %v623 = vmul.f32 %v493, %v618
        %v624 = vmul.f32 %v494, %v619
        %v625 = vmul.f32 %v495, %v620
        %s626 = smul.u32 %s239, 16
        %s627 = scalar_lea.vmem [#allocation2], %s626
        %628 = vst.msk [vmem:[%s627 + $0x1] sm:$0xff] %vm243, %v621
        %629 = vst.msk [vmem:[%s627 + $0x11] sm:$0xff] %vm243, %v622
        %630 = vst.msk [vmem:[%s627 + $0x21] sm:$0xff] %vm243, %v623
        %631 = vst.msk [vmem:[%s627 + $0x31] sm:$0xff] %vm243, %v624
        %632 = vst.msk [vmem:[%s627 + $0x41] sm:$0xff] %vm243, %v625
        %v633 = vld [vmem:[#allocation2] ss:$2 sm:$0xf]
        %s634 = scalar_lea.vmem [#allocation2], 32
        %v635 = vld [vmem:[%s634] ss:$2 sm:$0xf]
        %v638 = vcombine.low %v633, %v635
        %640 = vst.msk [vmem:[#allocation4] sm:$0xff] %vm243, %v638
        %s641 = scalar_lea.vmem [#allocation2], 1
        %v642 = vld [vmem:[%s641] ss:$2 sm:$0xf]
        %s643 = scalar_lea.vmem [#allocation2], 33
        %v644 = vld [vmem:[%s643] ss:$2 sm:$0xf]
        %v647 = vcombine.low %v642, %v644
        %648 = vrot.lane.b32.xlu0 %v647, 16
        %v649 = vpop.permute.xlu0 %648
        %651 = vst.msk [vmem:[#allocation4] sm:$0xff] %vm294, %v649
        %s652 = scalar_lea.vmem [#allocation2], 2
        %v653 = vld [vmem:[%s652] ss:$2 sm:$0xf]
        %s654 = scalar_lea.vmem [#allocation2], 34
        %v655 = vld [vmem:[%s654] ss:$2 sm:$0xf]
        %v658 = vcombine.low %v653, %v655
        %659 = vrot.lane.b32.xlu0 %v658, 32
        %v660 = vpop.permute.xlu0 %659
        %662 = vst.msk [vmem:[#allocation4] sm:$0xff] %vm328, %v660
        %s663 = scalar_lea.vmem [#allocation2], 16
        %v664 = vld [vmem:[%s663] ss:$2 sm:$0xf]
        %s665 = scalar_lea.vmem %s663, 32 [#allocation2]
        %v666 = vld [vmem:[%s665] ss:$2 sm:$0xf]
        %v669 = vcombine.low %v664, %v666
        %670 = vrot.lane.b32.xlu0 %v669, 48
        %v671 = vpop.permute.xlu0 %670
        %673 = vst.msk [vmem:[#allocation4] sm:$0xff] %vm359, %v671
        %s674 = scalar_lea.vmem %s663, 1 [#allocation2]
        %v675 = vld [vmem:[%s674] ss:$2 sm:$0xf]
        %s676 = scalar_lea.vmem %s663, 33 [#allocation2]
        %v677 = vld [vmem:[%s676] ss:$2 sm:$0xf]
        %v680 = vcombine.low %v675, %v677
        %681 = vrot.lane.b32.xlu0 %v680, 64
        %v682 = vpop.permute.xlu0 %681
        %vm684 = vcmask 654848
        %685 = vst.msk [vmem:[#allocation4] sm:$0xff] %vm684, %v682
        %s686 = scalar_lea.vmem %s663, 2 [#allocation2]
        %v687 = vld [vmem:[%s686] ss:$2 sm:$0xf]
        %s688 = scalar_lea.vmem %s663, 34 [#allocation2]
        %v689 = vld [vmem:[%s688] ss:$2 sm:$0xf]
        %v692 = vcombine.low %v687, %v689
        %693 = vrot.lane.b32.xlu0 %v692, 80
        %v694 = vpop.permute.xlu0 %693
        %vm696 = vcmask 786048
        %697 = vst.msk [vmem:[#allocation4] sm:$0xff] %vm696, %v694
        %s698 = scalar_lea.vmem [#allocation2], 32
        %v699 = vld [vmem:[%s698] ss:$2 sm:$0xf]
        %s700 = scalar_lea.vmem %s698, 32 [#allocation2]
        %v701 = vld [vmem:[%s700] ss:$2 sm:$0xf]
        %v704 = vcombine.low %v699, %v701
        %705 = vrot.lane.b32.xlu0 %v704, 96
        %v706 = vpop.permute.xlu0 %705
        %vm708 = vcmask 917248
        %709 = vst.msk [vmem:[#allocation4] sm:$0xff] %vm708, %v706
        %s710 = scalar_lea.vmem %s698, 1 [#allocation2]
        %v711 = vld [vmem:[%s710] ss:$2 sm:$0xf]
        %s712 = scalar_lea.vmem %s698, 33 [#allocation2]
        %v713 = vld [vmem:[%s712] ss:$2 sm:$0xf]
        %v716 = vcombine.low %v711, %v713
        %717 = vrot.lane.b32.xlu0 %v716, 112
        %v718 = vpop.permute.xlu0 %717
        %vm720 = vcmask 1048448
        %721 = vst.msk [vmem:[#allocation4] sm:$0xff] %vm720, %v718
        %s722 = scalar_lea.vmem %s698, 2 [#allocation2]
        %v723 = vld [vmem:[%s722] ss:$2 sm:$0xf]
        %s724 = scalar_lea.vmem %s698, 34 [#allocation2]
        %v725 = vld [vmem:[%s724] ss:$2 sm:$0xf]
        %v728 = vcombine.low %v723, %v725
        %730 = vst.msk [vmem:[#allocation4 + $0x8] sm:$0xff] %vm243, %v728
        %v731 = vld [vmem:[#allocation4] sm:$0xff]
        %v732 = vld [vmem:[#allocation4 + $0x8] sm:$0xff]
        %v733 = vld [vmem:[%s3] sm:$0xff]
        %v734 = vld [vmem:[%s3 + $0x8] sm:$0xff]
        %v735 = vld [vmem:[%s3 + $0x10] sm:$0xff]
        %v736 = vld [vmem:[%s3 + $0x18] sm:$0xff]
        %v737 = vld [vmem:[%s3 + $0x20] sm:$0xff]
        %v738 = vld [vmem:[%s3 + $0x28] sm:$0xff]
        %v739 = vld [vmem:[%s3 + $0x30] sm:$0xff]
        %v740 = vld [vmem:[%s3 + $0x38] sm:$0xff]
        %v741 = vld [vmem:[%s3 + $0x40] sm:$0xff]
        %v742 = vld [vmem:[%s3 + $0x48] sm:$0xff]
        %v743 = vld [vmem:[%s3 + $0x50] sm:$0xff]
        %v744 = vld [vmem:[%s3 + $0x58] sm:$0xff]
        %v745 = vld [vmem:[%s3 + $0x60] sm:$0xff]
        %v746 = vld [vmem:[%s3 + $0x68] sm:$0xff]
        %v747 = vld [vmem:[%s3 + $0x70] sm:$0xff]
        %v748 = vld [vmem:[%s3 + $0x78] sm:$0xff]
        %v749 = vld [vmem:[%s3 + $0x80] sm:$0xff]
        %v750 = vld [vmem:[%s3 + $0x88] sm:$0xff]
        %v751 = vld [vmem:[%s4] sm:$0x1]
        %v753 = vlaneseq
        %v754 = vshrl.u32 %v753, 7
        %v755 = vsub.s32 0, %v754
        %v756 = vrot.slane %v751, %v755
        %v759 = vsel %vm243, %v732, 0
        %761 = vmatprep.subr.mxu0 0.0
        %762 = vmatpush1.msra.mxu0 %v748
        %763 = vmatprep.subr.mxu0 0.0
        %764 = vmatpush1.msra.mxu0 %v747
        %765 = vmatprep.subr.mxu0 0.0
        %766 = vmatpush1.msra.mxu0 %v746
        %767 = vmatprep.subr.mxu0 0.0
        %768 = vmatpush1.msra.mxu0 %v745
        %769 = vmatprep.subr.mxu0 0.0
        %770 = vmatpush1.msra.mxu0 %v744
        %771 = vmatprep.subr.mxu0 0.0
        %772 = vmatpush1.msra.mxu0 %v743
        %773 = vmatprep.subr.mxu0 0.0
        %774 = vmatpush1.msra.mxu0 %v742
        %775 = vmatprep.subr.mxu0 0.0
        %776 = vmatpush1.msra.mxu0 %v741
        %777 = vmatprep.subr.mxu0 0.0
        %778 = vmatpush1.msra.mxu0 %v740
        %779 = vmatprep.subr.mxu0 0.0
        %780 = vmatpush1.msra.mxu0 %v739
        %781 = vmatprep.subr.mxu0 0.0
        %782 = vmatpush1.msra.mxu0 %v738
        %783 = vmatprep.subr.mxu0 0.0
        %784 = vmatpush1.msra.mxu0 %v737
        %785 = vmatprep.subr.mxu0 0.0
        %786 = vmatpush1.msra.mxu0 %v736
        %787 = vmatprep.subr.mxu0 0.0
        %788 = vmatpush1.msra.mxu0 %v735
        %789 = vmatprep.subr.mxu0 0.0
        %790 = vmatpush1.msra.mxu0 %v734
        %791 = vmatprep.subr.mxu0 0.0
        %792 = vmatpush1.msra.mxu0 %v733
        %793 = vmatprep.subr.mxu0 0.0
        %794 = vmatpush2.msra.mxu0 0.0
        %795 = vmatprep.subr.mxu0 0.0
        %796 = vmatpush2.msra.mxu0 0.0
        %797 = vmatprep.subr.mxu0 0.0
        %798 = vmatpush2.msra.mxu0 0.0
        %799 = vmatprep.subr.mxu0 0.0
        %800 = vmatpush2.msra.mxu0 0.0
        %801 = vmatprep.subr.mxu0 0.0
        %802 = vmatpush2.msra.mxu0 0.0
        %803 = vmatprep.subr.mxu0 0.0
        %804 = vmatpush2.msra.mxu0 0.0
        %805 = vmatprep.subr.mxu0 0.0
        %806 = vmatpush2.msra.mxu0 0.0
        %807 = vmatprep.subr.mxu0 0.0
        %808 = vmatpush2.msra.mxu0 0.0
        %809 = vmatprep.subr.mxu0 0.0
        %810 = vmatpush2.msra.mxu0 0.0
        %811 = vmatprep.subr.mxu0 0.0
        %812 = vmatpush2.msra.mxu0 0.0
        %813 = vmatprep.subr.mxu0 0.0
        %814 = vmatpush2.msra.mxu0 0.0
        %815 = vmatprep.subr.mxu0 0.0
        %816 = vmatpush2.msra.mxu0 0.0
        %817 = vmatprep.subr.mxu0 0.0
        %818 = vmatpush2.msra.mxu0 0.0
        %819 = vmatprep.subr.mxu0 0.0
        %820 = vmatpush2.msra.mxu0 0.0
        %821 = vmatprep.subr.mxu0 0.0
        %822 = vmatpush2.msra.mxu0 %v750
        %823 = vmatprep.subr.mxu0 0.0
        %824 = vmatpush2.msra.mxu0 %v749
        %825 = vmatprep.mubr.f32.mxu0 %v759
        %826 = vmatmul.mubr.f32.gmra.mxu0 %v731
        %v827 = vpop.f32.mrf.mxu0
        %v828 = vadd.f32 %v756, %v827
        %v829 = vpop.f32.mrf.mxu0
        %830 = vdwg.mxu0
        %v832 = vcombine.high %v828, %v828
        %vm834 = vcmask 257024
        %835 = vst.msk [vmem:[%s231] sm:$0xf] %vm834, %v828
        %836 = vst.msk [vmem:[%s231 + $0x4] sm:$0xf] %vm834, %v832
        %s837 = sand.u32 %s151, 1
        %s838 = scalar_lea.sflag [#allocation6], %s837
        %s839 = sand.u32 %s151, 1
        %s840 = smul.addr %s839, 8
        %s841 = scalar_lea.vmem [#allocation5], %s840
        // Predicated region
        $region41: #{patch_embed_forward.1} parent=39 // pred_check
          %p842 = pneg %p161
        $region42: #{patch_embed_forward.1} parent=39 // pred_check_branch
          %844 = sbr.rel (%p842) target = $region44
        $region43: #{patch_embed_forward.1} parent=39 // pred_region
          %s845 = smul.u32 2, %s24
          %s847 = ssub.s32 128, 128
          %848 = vsyncadd %s838, %s847
          %s849 = smul.addr %s23, 4
          %s850 = sadd.s32 %s845, %s849
          %s851 = smul.addr %s850, 64
          %s852 = scalar_lea.hbm %s5, %s851
          %s853 = sshll.u32 %s841, 4
          %s854 = int_to_ptr.vmem [resolvable:$true] %s853
          %859 = dma.vmem_to_hbm [thread:$0]  %s854, 128, %s852, %s838, 64, 64, 4
        $region44: #{patch_embed_forward.1} parent=39 // pred_fallthru
          _
      $region40: #{patch_embed_forward.1} parent=5 // pred_fallthru
        _
      %p860 = scmp.le.s32.totalorder 2, %s14
      // Predicated region
      $region45: #{patch_embed_forward.1} parent=5 // pred_check
        %p861 = pneg %p860
      $region46: #{patch_embed_forward.1} parent=5 // pred_check_branch
        %863 = sbr.rel (%p861) target = $region48
      $region47: #{patch_embed_forward.1} parent=5 // pred_region
        %s864 = ssub.s32 %s14, 2
        // Predicated region
        $region49: #{patch_embed_forward.1} parent=47 // pred_check
          %p865 = pneg %p167
        $region50: #{patch_embed_forward.1} parent=47 // pred_check_branch
          %867 = sbr.rel (%p865) target = $region52
        $region51: #{patch_embed_forward.1} parent=47 // pred_region
          %s868 = sand.u32 %s152, 1
          %s869 = scalar_lea.sflag [#allocation6], %s868
          %s870 = sand.u32 %s152, 1
          %s871 = smul.addr %s870, 8
          %s872 = scalar_lea.vmem [#allocation5], %s871
          %873 = dma.done %s869, 128
        $region52: #{patch_embed_forward.1} parent=47 // pred_fallthru
          _
      $region48: #{patch_embed_forward.1} parent=5 // pred_fallthru
        _
    $region6: #{patch_embed_forward.1} parent=1 // loop_footer
      %s18 = sadd.s32 1, %s14
    $region7: #{patch_embed_forward.1} parent=1 // loop_footer_branch
      %13 = sbr.rel target = $region3
    $region8: #{patch_embed_forward.1} parent=1 // loop_exit
      _
    %874 = vsyncpa [#allocation6], 1
    %s875 = scalar_lea.sflag [#allocation6], 1
    %876 = vsyncpa %s875, 1

</llo_original>
